<compile_context>
chip_gen: v7x
topology: tpu7x:2x2x1
jax: 0.10.0
libtpu: 0.0.40
codegen_flags: <defaults>
</compile_context>

<pallas_src>
import jax
import jax.numpy as jnp
from jax.experimental import pallas as pl
from jax.experimental.pallas import tpu as pltpu


def _round_up(n, m):
    return ((n + m - 1) // m) * m


def _layer1_fma(x, w1, b1):
    """x @ w1 + b1 as an unrolled broadcast-FMA (K = in_features is tiny: 4..6).

    Exact f32 on the VPU (no MXU reduced-precision path).  Used by both the
    kernel body and the pure-JAX reference so the correctness comparison is
    independent of the TPU's default f32-matmul precision.
    """
    h = b1 + x[:, 0:1] * w1[0:1, :]
    for k in range(1, w1.shape[0]):          # unrolled at trace time (K <= 6)
        h = h + x[:, k:k + 1] * w1[k:k + 1, :]
    return h


def _make_encoder_kernel(nv, ne, tm, n_tiles):
    """Builds the fused psi_v / psi_e kernel; nv/ne/tm/n_tiles are trace-time ints."""
    tiles_v = pl.cdiv(nv, tm)
    tiles_e = pl.cdiv(ne, tm)

    def kernel(u_ref, e_ref,
               wv1_ref, bv1_ref, wv2_ref, bv2_ref,
               we1_ref, be1_ref, we2_ref, be2_ref,
               v_out_ref, e_out_ref):
        i = pl.program_id(0)

        def mlp(x_ref, w1_ref, b1_ref, w2_ref, b2_ref, out_ref):
            x = x_ref[...]
            if x.dtype != jnp.float32:       # trace-time branch; no cast when already f32
                x = x.astype(jnp.float32)
            # Layer 1: tiny-K -> VPU FMA.  Layer 2: MXU matmul, f32 accumulation.
            h = jnp.maximum(_layer1_fma(x, w1_ref[...], b1_ref[...]), 0.0)
            out = jnp.dot(h, w2_ref[...],
                          preferred_element_type=jnp.float32) + b2_ref[...]
            out_ref[...] = out.astype(out_ref.dtype)

        def do_nodes():
            mlp(u_ref, wv1_ref, bv1_ref, wv2_ref, bv2_ref, v_out_ref)

        def do_edges():
            mlp(e_ref, we1_ref, be1_ref, we2_ref, be2_ref, e_out_ref)

        # Skip compute on tiles that are 100% padding (only possible for the side
        # with fewer rows).  The unwritten output tile is still DMA'd back but is
        # sliced off by the wrapper, so its contents are never observed.
        if tiles_v < n_tiles:
            pl.when(i < tiles_v)(do_nodes)
        else:
            do_nodes()
        if tiles_e < n_tiles:
            pl.when(i < tiles_e)(do_edges)
        else:
            do_edges()

    return kernel


def encoder_forward(u, e, psi_v_params, psi_e_params, *, tile_rows=1024):
    """Encoder.forward equivalent: returns (psi_v(u), psi_e(e)) from one fused kernel."""
    wv1, bv1, wv2, bv2 = psi_v_params
    we1, be1, we2, be2 = psi_e_params
    nv, fv = u.shape
    ne, fe = e.shape
    hidden = wv2.shape[1]

    # Row tile: sublane-aligned (multiple of 8), capped at tile_rows.
    tm = _round_up(min(tile_rows, _round_up(max(nv, ne), 8)), 8)
    n_tiles = max(pl.cdiv(nv, tm), pl.cdiv(ne, tm))
    rows = n_tiles * tm

    # Both inputs are padded to the same number of row tiles so one grid drives
    # both MLPs; fully-padded tiles skip compute via pl.when inside the kernel.
    # TODO(synk): if num_edges >> num_nodes at real graph sizes, split into two
    # gridded pallas_calls to also avoid the padded node rows' HBM footprint.
    u_p = jnp.pad(u, ((0, rows - nv), (0, 0))) if rows != nv else u
    e_p = jnp.pad(e, ((0, rows - ne), (0, 0))) if rows != ne else e

    def row_spec(feat):
        return pl.BlockSpec((tm, feat), lambda i: (i, 0))

    def resident_spec(arr):
        # Full-array block + constant index_map -> DMA'd once, VMEM-resident after.
        return pl.BlockSpec(arr.shape, lambda i: (0, 0))

    kernel = _make_encoder_kernel(nv, ne, tm, n_tiles)

    v_full, e_full = pl.pallas_call(
        kernel,
        out_shape=(jax.ShapeDtypeStruct((rows, hidden), u.dtype),
                   jax.ShapeDtypeStruct((rows, hidden), e.dtype)),
        grid=(n_tiles,),
        in_specs=[row_spec(fv), row_spec(fe),
                  resident_spec(wv1), resident_spec(bv1),
                  resident_spec(wv2), resident_spec(bv2),
                  resident_spec(we1), resident_spec(be1),
                  resident_spec(we2), resident_spec(be2)],
        out_specs=(pl.BlockSpec((tm, hidden), lambda i: (i, 0)),
                   pl.BlockSpec((tm, hidden), lambda i: (i, 0))),
        compiler_params=pltpu.CompilerParams(
            dimension_semantics=("parallel",)),   # row axis -> v7x megacore sharding
    )(u_p, e_p, wv1, bv1, wv2, bv2, we1, be1, we2, be2)

    return v_full[:nv], e_full[:ne]


def init_mlp_params(key, in_features, hidden_features):
    """Deterministic init for a Linear->ReLU->Linear MLP (weights stored [in, out])."""
    k1, k2, k3, k4 = jax.random.split(key, 4)
    s1 = 1.0 / jnp.sqrt(jnp.float32(in_features))
    s2 = 1.0 / jnp.sqrt(jnp.float32(hidden_features))
    w1 = jax.random.uniform(k1, (in_features, hidden_features), jnp.float32, -s1, s1)
    b1 = jax.random.uniform(k2, (1, hidden_features), jnp.float32, -s1, s1)
    w2 = jax.random.uniform(k3, (hidden_features, hidden_features), jnp.float32, -s2, s2)
    b2 = jax.random.uniform(k4, (1, hidden_features), jnp.float32, -s2, s2)
    return w1, b1, w2, b2


def _reference_mlp(x, w1, b1, w2, b2):
    # Layer 1 uses the same exact-f32 FMA formulation as the kernel (plain jnp ops);
    # layer 2 is a standard matmul, matching the kernel's MXU path.
    h = jnp.maximum(_layer1_fma(x, w1, b1), 0.0)
    return h @ w2 + b2


if __name__ == "__main__":
    # Small, module-consistent shapes.
    num_nodes, node_features = 16, 4
    num_edges, edge_features = 32, 6
    hidden_features = 32

    key = jax.random.PRNGKey(0)
    k_u, k_e, k_pv, k_pe = jax.random.split(key, 4)

    u = jax.random.normal(k_u, (num_nodes, node_features), jnp.float32)
    e = jax.random.normal(k_e, (num_edges, edge_features), jnp.float32)

    psi_v_params = init_mlp_params(k_pv, node_features, hidden_features)
    psi_e_params = init_mlp_params(k_pe, edge_features, hidden_features)

    v_out, e_out = encoder_forward(u, e, psi_v_params, psi_e_params)
    v_out = jax.block_until_ready(v_out)
    e_out = jax.block_until_ready(e_out)

    # Sanity check against a pure-JAX reference.  Tolerance accounts for the TPU's
    # default reduced-precision f32 matmul path in the hidden-width second layer.
    v_ref = _reference_mlp(u, *psi_v_params)
    e_ref = _reference_mlp(e, *psi_e_params)
    assert v_out.shape == (num_nodes, hidden_features)
    assert e_out.shape == (num_edges, hidden_features)
    assert jnp.allclose(v_out, v_ref, atol=2e-3, rtol=2e-3)
    assert jnp.allclose(e_out, e_ref, atol=2e-3, rtol=2e-3)

    print("KERNEL_OK")
</pallas_src>

<mosaic_0001>
module attributes {stable_mosaic.version = 11 : i64} {
  func.func @kernel(%arg0: i32, %arg1: memref<32x4xf32, #tpu.memory_space<vmem>>, %arg2: memref<32x6xf32, #tpu.memory_space<vmem>>, %arg3: memref<4x32xf32, #tpu.memory_space<vmem>>, %arg4: memref<1x32xf32, #tpu.memory_space<vmem>>, %arg5: memref<32x32xf32, #tpu.memory_space<vmem>>, %arg6: memref<1x32xf32, #tpu.memory_space<vmem>>, %arg7: memref<6x32xf32, #tpu.memory_space<vmem>>, %arg8: memref<1x32xf32, #tpu.memory_space<vmem>>, %arg9: memref<32x32xf32, #tpu.memory_space<vmem>>, %arg10: memref<1x32xf32, #tpu.memory_space<vmem>>, %arg11: memref<32x32xf32, #tpu.memory_space<vmem>>, %arg12: memref<32x32xf32, #tpu.memory_space<vmem>>) attributes {dimension_semantics = [#tpu.dimension_semantics<parallel>], iteration_bounds = array<i64: 1>, scalar_prefetch = 0 : i64, scratch_operands = 0 : i64, tpu.core_type = #tpu.core_type<tc>, window_params = [{transform_indices = @transform_0, window_bounds = array<i64: 32, 4>}, {transform_indices = @transform_1, window_bounds = array<i64: 32, 6>}, {pipeline_mode = #tpu.pipeline_mode<synchronous>, transform_indices = @transform_2, window_bounds = array<i64: 4, 32>}, {pipeline_mode = #tpu.pipeline_mode<synchronous>, transform_indices = @transform_3, window_bounds = array<i64: 1, 32>}, {pipeline_mode = #tpu.pipeline_mode<synchronous>, transform_indices = @transform_4, window_bounds = array<i64: 32, 32>}, {pipeline_mode = #tpu.pipeline_mode<synchronous>, transform_indices = @transform_5, window_bounds = array<i64: 1, 32>}, {pipeline_mode = #tpu.pipeline_mode<synchronous>, transform_indices = @transform_6, window_bounds = array<i64: 6, 32>}, {pipeline_mode = #tpu.pipeline_mode<synchronous>, transform_indices = @transform_7, window_bounds = array<i64: 1, 32>}, {pipeline_mode = #tpu.pipeline_mode<synchronous>, transform_indices = @transform_8, window_bounds = array<i64: 32, 32>}, {pipeline_mode = #tpu.pipeline_mode<synchronous>, transform_indices = @transform_9, window_bounds = array<i64: 1, 32>}, {transform_indices = @transform_10, window_bounds = array<i64: 32, 32>}, {transform_indices = @transform_11, window_bounds = array<i64: 32, 32>}]} {
    %c0 = arith.constant 0 : index
    %c0_0 = arith.constant 0 : index
    %0 = vector.load %arg1[%c0, %c0_0] : memref<32x4xf32, #tpu.memory_space<vmem>>, vector<32x4xf32>
    %c0_1 = arith.constant 0 : index
    %c0_2 = arith.constant 0 : index
    %1 = vector.load %arg3[%c0_1, %c0_2] : memref<4x32xf32, #tpu.memory_space<vmem>>, vector<4x32xf32>
    %c0_3 = arith.constant 0 : index
    %c0_4 = arith.constant 0 : index
    %2 = vector.load %arg4[%c0_3, %c0_4] : memref<1x32xf32, #tpu.memory_space<vmem>>, vector<1x32xf32>
    %3 = vector.extract_strided_slice %0 {offsets = [0, 0], sizes = [32, 1], strides = [1, 1]} : vector<32x4xf32> to vector<32x1xf32>
    %4 = vector.extract_strided_slice %1 {offsets = [0, 0], sizes = [1, 32], strides = [1, 1]} : vector<4x32xf32> to vector<1x32xf32>
    %5 = vector.broadcast %3 : vector<32x1xf32> to vector<32x32xf32>
    %6 = vector.broadcast %4 : vector<1x32xf32> to vector<32x32xf32>
    %7 = arith.mulf %5, %6 : vector<32x32xf32>
    %8 = vector.broadcast %2 : vector<1x32xf32> to vector<32x32xf32>
    %9 = arith.addf %8, %7 : vector<32x32xf32>
    %10 = vector.extract_strided_slice %0 {offsets = [0, 1], sizes = [32, 1], strides = [1, 1]} : vector<32x4xf32> to vector<32x1xf32>
    %11 = vector.extract_strided_slice %1 {offsets = [1, 0], sizes = [1, 32], strides = [1, 1]} : vector<4x32xf32> to vector<1x32xf32>
    %12 = vector.broadcast %10 : vector<32x1xf32> to vector<32x32xf32>
    %13 = vector.broadcast %11 : vector<1x32xf32> to vector<32x32xf32>
    %14 = arith.mulf %12, %13 : vector<32x32xf32>
    %15 = arith.addf %9, %14 : vector<32x32xf32>
    %16 = vector.extract_strided_slice %0 {offsets = [0, 2], sizes = [32, 1], strides = [1, 1]} : vector<32x4xf32> to vector<32x1xf32>
    %17 = vector.extract_strided_slice %1 {offsets = [2, 0], sizes = [1, 32], strides = [1, 1]} : vector<4x32xf32> to vector<1x32xf32>
    %18 = vector.broadcast %16 : vector<32x1xf32> to vector<32x32xf32>
    %19 = vector.broadcast %17 : vector<1x32xf32> to vector<32x32xf32>
    %20 = arith.mulf %18, %19 : vector<32x32xf32>
    %21 = arith.addf %15, %20 : vector<32x32xf32>
    %22 = vector.extract_strided_slice %0 {offsets = [0, 3], sizes = [32, 1], strides = [1, 1]} : vector<32x4xf32> to vector<32x1xf32>
    %23 = vector.extract_strided_slice %1 {offsets = [3, 0], sizes = [1, 32], strides = [1, 1]} : vector<4x32xf32> to vector<1x32xf32>
    %24 = vector.broadcast %22 : vector<32x1xf32> to vector<32x32xf32>
    %25 = vector.broadcast %23 : vector<1x32xf32> to vector<32x32xf32>
    %26 = arith.mulf %24, %25 : vector<32x32xf32>
    %27 = arith.addf %21, %26 : vector<32x32xf32>
    %cst = arith.constant 0.000000e+00 : f32
    %28 = vector.broadcast %cst : f32 to vector<32x32xf32>
    %29 = arith.maximumf %27, %28 : vector<32x32xf32>
    %c0_5 = arith.constant 0 : index
    %c0_6 = arith.constant 0 : index
    %30 = vector.load %arg5[%c0_5, %c0_6] : memref<32x32xf32, #tpu.memory_space<vmem>>, vector<32x32xf32>
    %cst_7 = arith.constant dense<0.000000e+00> : vector<32x32xf32>
    %31 = tpu.matmul %29, %30, %cst_7 {dimension_numbers = #tpu.dot_dimension_numbers<[1], [0], [0], [1], [0, 0, 1, 1], [], []>} : vector<32x32xf32>, vector<32x32xf32>, vector<32x32xf32> -> vector<32x32xf32>
    %c0_8 = arith.constant 0 : index
    %c0_9 = arith.constant 0 : index
    %32 = vector.load %arg6[%c0_8, %c0_9] : memref<1x32xf32, #tpu.memory_space<vmem>>, vector<1x32xf32>
    %33 = vector.broadcast %32 : vector<1x32xf32> to vector<32x32xf32>
    %34 = arith.addf %31, %33 : vector<32x32xf32>
    %c0_10 = arith.constant 0 : index
    %c0_11 = arith.constant 0 : index
    %35 = vector.load %arg11[%c0_10, %c0_11] : memref<32x32xf32, #tpu.memory_space<vmem>>, vector<32x32xf32>
    tpu.vector_store %arg11[%c0_10, %c0_11], %34 {strides = array<i32>} : memref<32x32xf32, #tpu.memory_space<vmem>>, vector<32x32xf32>,
    %c0_12 = arith.constant 0 : index
    %c0_13 = arith.constant 0 : index
    %36 = vector.load %arg2[%c0_12, %c0_13] : memref<32x6xf32, #tpu.memory_space<vmem>>, vector<32x6xf32>
    %c0_14 = arith.constant 0 : index
    %c0_15 = arith.constant 0 : index
    %37 = vector.load %arg7[%c0_14, %c0_15] : memref<6x32xf32, #tpu.memory_space<vmem>>, vector<6x32xf32>
    %c0_16 = arith.constant 0 : index
    %c0_17 = arith.constant 0 : index
    %38 = vector.load %arg8[%c0_16, %c0_17] : memref<1x32xf32, #tpu.memory_space<vmem>>, vector<1x32xf32>
    %39 = vector.extract_strided_slice %36 {offsets = [0, 0], sizes = [32, 1], strides = [1, 1]} : vector<32x6xf32> to vector<32x1xf32>
    %40 = vector.extract_strided_slice %37 {offsets = [0, 0], sizes = [1, 32], strides = [1, 1]} : vector<6x32xf32> to vector<1x32xf32>
    %41 = vector.broadcast %39 : vector<32x1xf32> to vector<32x32xf32>
    %42 = vector.broadcast %40 : vector<1x32xf32> to vector<32x32xf32>
    %43 = arith.mulf %41, %42 : vector<32x32xf32>
    %44 = vector.broadcast %38 : vector<1x32xf32> to vector<32x32xf32>
    %45 = arith.addf %44, %43 : vector<32x32xf32>
    %46 = vector.extract_strided_slice %36 {offsets = [0, 1], sizes = [32, 1], strides = [1, 1]} : vector<32x6xf32> to vector<32x1xf32>
    %47 = vector.extract_strided_slice %37 {offsets = [1, 0], sizes = [1, 32], strides = [1, 1]} : vector<6x32xf32> to vector<1x32xf32>
    %48 = vector.broadcast %46 : vector<32x1xf32> to vector<32x32xf32>
    %49 = vector.broadcast %47 : vector<1x32xf32> to vector<32x32xf32>
    %50 = arith.mulf %48, %49 : vector<32x32xf32>
    %51 = arith.addf %45, %50 : vector<32x32xf32>
    %52 = vector.extract_strided_slice %36 {offsets = [0, 2], sizes = [32, 1], strides = [1, 1]} : vector<32x6xf32> to vector<32x1xf32>
    %53 = vector.extract_strided_slice %37 {offsets = [2, 0], sizes = [1, 32], strides = [1, 1]} : vector<6x32xf32> to vector<1x32xf32>
    %54 = vector.broadcast %52 : vector<32x1xf32> to vector<32x32xf32>
    %55 = vector.broadcast %53 : vector<1x32xf32> to vector<32x32xf32>
    %56 = arith.mulf %54, %55 : vector<32x32xf32>
    %57 = arith.addf %51, %56 : vector<32x32xf32>
    %58 = vector.extract_strided_slice %36 {offsets = [0, 3], sizes = [32, 1], strides = [1, 1]} : vector<32x6xf32> to vector<32x1xf32>
    %59 = vector.extract_strided_slice %37 {offsets = [3, 0], sizes = [1, 32], strides = [1, 1]} : vector<6x32xf32> to vector<1x32xf32>
    %60 = vector.broadcast %58 : vector<32x1xf32> to vector<32x32xf32>
    %61 = vector.broadcast %59 : vector<1x32xf32> to vector<32x32xf32>
    %62 = arith.mulf %60, %61 : vector<32x32xf32>
    %63 = arith.addf %57, %62 : vector<32x32xf32>
    %64 = vector.extract_strided_slice %36 {offsets = [0, 4], sizes = [32, 1], strides = [1, 1]} : vector<32x6xf32> to vector<32x1xf32>
    %65 = vector.extract_strided_slice %37 {offsets = [4, 0], sizes = [1, 32], strides = [1, 1]} : vector<6x32xf32> to vector<1x32xf32>
    %66 = vector.broadcast %64 : vector<32x1xf32> to vector<32x32xf32>
    %67 = vector.broadcast %65 : vector<1x32xf32> to vector<32x32xf32>
    %68 = arith.mulf %66, %67 : vector<32x32xf32>
    %69 = arith.addf %63, %68 : vector<32x32xf32>
    %70 = vector.extract_strided_slice %36 {offsets = [0, 5], sizes = [32, 1], strides = [1, 1]} : vector<32x6xf32> to vector<32x1xf32>
    %71 = vector.extract_strided_slice %37 {offsets = [5, 0], sizes = [1, 32], strides = [1, 1]} : vector<6x32xf32> to vector<1x32xf32>
    %72 = vector.broadcast %70 : vector<32x1xf32> to vector<32x32xf32>
    %73 = vector.broadcast %71 : vector<1x32xf32> to vector<32x32xf32>
    %74 = arith.mulf %72, %73 : vector<32x32xf32>
    %75 = arith.addf %69, %74 : vector<32x32xf32>
    %cst_18 = arith.constant 0.000000e+00 : f32
    %76 = vector.broadcast %cst_18 : f32 to vector<32x32xf32>
    %77 = arith.maximumf %75, %76 : vector<32x32xf32>
    %c0_19 = arith.constant 0 : index
    %c0_20 = arith.constant 0 : index
    %78 = vector.load %arg9[%c0_19, %c0_20] : memref<32x32xf32, #tpu.memory_space<vmem>>, vector<32x32xf32>
    %cst_21 = arith.constant dense<0.000000e+00> : vector<32x32xf32>
    %79 = tpu.matmul %77, %78, %cst_21 {dimension_numbers = #tpu.dot_dimension_numbers<[1], [0], [0], [1], [0, 0, 1, 1], [], []>} : vector<32x32xf32>, vector<32x32xf32>, vector<32x32xf32> -> vector<32x32xf32>
    %c0_22 = arith.constant 0 : index
    %c0_23 = arith.constant 0 : index
    %80 = vector.load %arg10[%c0_22, %c0_23] : memref<1x32xf32, #tpu.memory_space<vmem>>, vector<1x32xf32>
    %81 = vector.broadcast %80 : vector<1x32xf32> to vector<32x32xf32>
    %82 = arith.addf %79, %81 : vector<32x32xf32>
    %c0_24 = arith.constant 0 : index
    %c0_25 = arith.constant 0 : index
    %83 = vector.load %arg12[%c0_24, %c0_25] : memref<32x32xf32, #tpu.memory_space<vmem>>, vector<32x32xf32>
    tpu.vector_store %arg12[%c0_24, %c0_25], %82 {strides = array<i32>} : memref<32x32xf32, #tpu.memory_space<vmem>>, vector<32x32xf32>,
    return
  }
  func.func @transform_0(%arg0: i32) -> (i32, i32) {
    %c0_i32 = arith.constant 0 : i32
    %c0_i32_0 = arith.constant 0 : i32
    return %arg0, %c0_i32 : i32, i32
  }
  func.func @transform_1(%arg0: i32) -> (i32, i32) {
    %c0_i32 = arith.constant 0 : i32
    %c0_i32_0 = arith.constant 0 : i32
    return %arg0, %c0_i32 : i32, i32
  }
  func.func @transform_2(%arg0: i32) -> (i32, i32) {
    %c0_i32 = arith.constant 0 : i32
    %c0_i32_0 = arith.constant 0 : i32
    %c0_i32_1 = arith.constant 0 : i32
    return %c0_i32, %c0_i32_0 : i32, i32
  }
  func.func @transform_3(%arg0: i32) -> (i32, i32) {
    %c0_i32 = arith.constant 0 : i32
    %c0_i32_0 = arith.constant 0 : i32
    %c0_i32_1 = arith.constant 0 : i32
    return %c0_i32, %c0_i32_0 : i32, i32
  }
  func.func @transform_4(%arg0: i32) -> (i32, i32) {
    %c0_i32 = arith.constant 0 : i32
    %c0_i32_0 = arith.constant 0 : i32
    %c0_i32_1 = arith.constant 0 : i32
    return %c0_i32, %c0_i32_0 : i32, i32
  }
  func.func @transform_5(%arg0: i32) -> (i32, i32) {
    %c0_i32 = arith.constant 0 : i32
    %c0_i32_0 = arith.constant 0 : i32
    %c0_i32_1 = arith.constant 0 : i32
    return %c0_i32, %c0_i32_0 : i32, i32
  }
  func.func @transform_6(%arg0: i32) -> (i32, i32) {
    %c0_i32 = arith.constant 0 : i32
    %c0_i32_0 = arith.constant 0 : i32
    %c0_i32_1 = arith.constant 0 : i32
    return %c0_i32, %c0_i32_0 : i32, i32
  }
  func.func @transform_7(%arg0: i32) -> (i32, i32) {
    %c0_i32 = arith.constant 0 : i32
    %c0_i32_0 = arith.constant 0 : i32
    %c0_i32_1 = arith.constant 0 : i32
    return %c0_i32, %c0_i32_0 : i32, i32
  }
  func.func @transform_8(%arg0: i32) -> (i32, i32) {
    %c0_i32 = arith.constant 0 : i32
    %c0_i32_0 = arith.constant 0 : i32
    %c0_i32_1 = arith.constant 0 : i32
    return %c0_i32, %c0_i32_0 : i32, i32
  }
  func.func @transform_9(%arg0: i32) -> (i32, i32) {
    %c0_i32 = arith.constant 0 : i32
    %c0_i32_0 = arith.constant 0 : i32
    %c0_i32_1 = arith.constant 0 : i32
    return %c0_i32, %c0_i32_0 : i32, i32
  }
  func.func @transform_10(%arg0: i32) -> (i32, i32) {
    %c0_i32 = arith.constant 0 : i32
    %c0_i32_0 = arith.constant 0 : i32
    return %arg0, %c0_i32 : i32, i32
  }
  func.func @transform_11(%arg0: i32) -> (i32, i32) {
    %c0_i32 = arith.constant 0 : i32
    %c0_i32_0 = arith.constant 0 : i32
    return %arg0, %c0_i32 : i32, i32
  }
}

</mosaic_0001>

<llo_original>
// kernel: tpu_custom_call.1
$region0: #{tpu_custom_call.1}
  #allocation0 [shape = 'u32[]', space=smem, size = 0x4, offset = 0x4, fixed_abs, tag = 'smem constant byte address 0x4 - core index']
  #allocation1 [shape = 'u32[144,128]{1,0:T(1,128)}', space=vmem, size = 0x12000, scoped, tag = 'internal scratch']
  %s0 = inlined_call_operand.vmem [shape: f32[32,4], index: 0, kind: input, shape index: {}]
  %s1 = inlined_call_operand.vmem [shape: f32[32,6], index: 1, kind: input, shape index: {}]
  %s2 = inlined_call_operand.hbm [shape: f32[4,32], index: 2, kind: input, shape index: {}]
  %s3 = inlined_call_operand.vmem [shape: f32[1,32], index: 3, kind: input, shape index: {}]
  %s4 = inlined_call_operand.vmem [shape: f32[32,32], index: 4, kind: input, shape index: {}]
  %s5 = inlined_call_operand.vmem [shape: f32[1,32], index: 5, kind: input, shape index: {}]
  %s6 = inlined_call_operand.vmem [shape: f32[6,32], index: 6, kind: input, shape index: {}]
  %s7 = inlined_call_operand.vmem [shape: f32[1,32], index: 7, kind: input, shape index: {}]
  %s8 = inlined_call_operand.vmem [shape: f32[32,32], index: 8, kind: input, shape index: {}]
  %s9 = inlined_call_operand.vmem [shape: f32[1,32], index: 9, kind: input, shape index: {}]
  %s10 = inlined_call_operand.hbm [shape: f32[32,32], index: 10, kind: output, shape index: {0}]
  %s11 = inlined_call_operand.hbm [shape: f32[32,32], index: 11, kind: output, shape index: {1}]
  %12 = xla_tuple %s10, %s11
  %s13 = sld [smem:[#allocation0]]
  $region62: #{tpu_custom_call.1} parent=0
    _
  %s15 = ssub.s32 1, %s13
  %s16 = scalar_select 0, %s15, %s13
  $region1: #{tpu_custom_call.1} parent=0
    #allocation2 [shape = 'u8[2048]{0}', space=vmem, size = 0x800, scoped, tag = 'input window, operand 2, single buffered']
    #allocation3 [shape = 's32[1]{0}', space=sflag, size = 0x4, scoped, tag = 'scoped memory for tpu_custom_call.1']
    #allocation4 [shape = 's32[1]{0}', space=sflag, size = 0x4, scoped, tag = 'scoped memory for tpu_custom_call.1']
    #allocation5 [shape = 'u8[16384]{0}', space=vmem, size = 0x4000, scoped, tag = 'output window, operand 0, single buffered']
    #allocation6 [shape = 'u8[16384]{0}', space=vmem, size = 0x4000, scoped, tag = 'output window, operand 1, single buffered']
    #allocation7 [shape = 's32[1]{0}', space=sflag, size = 0x4, scoped, tag = 'scoped memory for tpu_custom_call.1']
    %17 = vsyncpa [#allocation3], 0
    %18 = vsyncpa [#allocation4], 0
    %19 = vsyncpa [#allocation7], 0
    // Predicated region
    $region2: #{tpu_custom_call.1} parent=1 // pred_check
      _
    $region3: #{tpu_custom_call.1} parent=1 // pred_check_branch
      %21 = sbr.rel (0) target = $region5
    $region4: #{tpu_custom_call.1} parent=1 // pred_region
      _
    $region5: #{tpu_custom_call.1} parent=1 // pred_fallthru
      _
    // Predicated region
    $region6: #{tpu_custom_call.1} parent=1 // pred_check
      _
    $region7: #{tpu_custom_call.1} parent=1 // pred_check_branch
      %23 = sbr.rel (0) target = $region9
    $region8: #{tpu_custom_call.1} parent=1 // pred_region
      _
    $region9: #{tpu_custom_call.1} parent=1 // pred_fallthru
      _
    // Predicated region
    $region10: #{tpu_custom_call.1} parent=1 // pred_check
      _
    $region11: #{tpu_custom_call.1} parent=1 // pred_check_branch
      %25 = sbr.rel (0) target = $region13
    $region12: #{tpu_custom_call.1} parent=1 // pred_region
      %s27 = ssub.s32 64, 64
      %28 = vsyncadd [#allocation3], %s27
      %s30 = sshll.u32 [#allocation2], 4
      %s31 = int_to_ptr.vmem [resolvable:$true] %s30
      %33 = dma.hbm_to_vmem [thread:$0]  %s2, 64, %s31, [#allocation3]
    $region13: #{tpu_custom_call.1} parent=1 // pred_fallthru
      _
    // Predicated region
    $region14: #{tpu_custom_call.1} parent=1 // pred_check
      _
    $region15: #{tpu_custom_call.1} parent=1 // pred_check_branch
      %35 = sbr.rel (0) target = $region17
    $region16: #{tpu_custom_call.1} parent=1 // pred_region
      _
    $region17: #{tpu_custom_call.1} parent=1 // pred_fallthru
      _
    // Predicated region
    $region18: #{tpu_custom_call.1} parent=1 // pred_check
      _
    $region19: #{tpu_custom_call.1} parent=1 // pred_check_branch
      %37 = sbr.rel (0) target = $region21
    $region20: #{tpu_custom_call.1} parent=1 // pred_region
      _
    $region21: #{tpu_custom_call.1} parent=1 // pred_fallthru
      _
    // Predicated region
    $region22: #{tpu_custom_call.1} parent=1 // pred_check
      _
    $region23: #{tpu_custom_call.1} parent=1 // pred_check_branch
      %39 = sbr.rel (0) target = $region25
    $region24: #{tpu_custom_call.1} parent=1 // pred_region
      _
    $region25: #{tpu_custom_call.1} parent=1 // pred_fallthru
      _
    // Predicated region
    $region26: #{tpu_custom_call.1} parent=1 // pred_check
      _
    $region27: #{tpu_custom_call.1} parent=1 // pred_check_branch
      %41 = sbr.rel (0) target = $region29
    $region28: #{tpu_custom_call.1} parent=1 // pred_region
      _
    $region29: #{tpu_custom_call.1} parent=1 // pred_fallthru
      _
    // Predicated region
    $region30: #{tpu_custom_call.1} parent=1 // pred_check
      _
    $region31: #{tpu_custom_call.1} parent=1 // pred_check_branch
      %43 = sbr.rel (0) target = $region33
    $region32: #{tpu_custom_call.1} parent=1 // pred_region
      _
    $region33: #{tpu_custom_call.1} parent=1 // pred_fallthru
      _
    // Predicated region
    $region34: #{tpu_custom_call.1} parent=1 // pred_check
      _
    $region35: #{tpu_custom_call.1} parent=1 // pred_check_branch
      %45 = sbr.rel (0) target = $region37
    $region36: #{tpu_custom_call.1} parent=1 // pred_region
      _
    $region37: #{tpu_custom_call.1} parent=1 // pred_fallthru
      _
    // Predicated region
    $region38: #{tpu_custom_call.1} parent=1 // pred_check
      _
    $region39: #{tpu_custom_call.1} parent=1 // pred_check_branch
      %47 = sbr.rel (0) target = $region41
    $region40: #{tpu_custom_call.1} parent=1 // pred_region
      _
    $region41: #{tpu_custom_call.1} parent=1 // pred_fallthru
      _
    // Predicated region
    $region42: #{tpu_custom_call.1} parent=1 // pred_check
      _
    $region43: #{tpu_custom_call.1} parent=1 // pred_check_branch
      %49 = sbr.rel (0) target = $region45
    $region44: #{tpu_custom_call.1} parent=1 // pred_region
      %50 = dma.done [#allocation3], 64
    $region45: #{tpu_custom_call.1} parent=1 // pred_fallthru
      _
    %v51 = vld [vmem:[%s0] sm:$0xff]
    %v52 = vld [vmem:[%s0 + $0x8] sm:$0xff]
    %v53 = vld [vmem:[%s0 + $0x10] sm:$0xff]
    %v54 = vld [vmem:[%s0 + $0x18] sm:$0xff]
    %v55 = vld [vmem:[#allocation2] sm:$0xf]
    %v56 = vld [vmem:[%s3] sm:$0x1]
    %58 = vset.pattern.permute.xlu0 0
    %59 = vperm.xlu0 %58, %v51
    %v60 = vpop.permute.xlu0 %59
    %63 = vset.pattern.permute.xlu0 0
    %64 = vperm.xlu0 %63, %v52
    %v65 = vpop.permute.xlu0 %64
    %68 = vset.pattern.permute.xlu0 0
    %69 = vperm.xlu0 %68, %v53
    %v70 = vpop.permute.xlu0 %69
    %73 = vset.pattern.permute.xlu0 0
    %74 = vperm.xlu0 %73, %v54
    %v75 = vpop.permute.xlu0 %74
    %v77 = vlaneseq
    %v78 = vshrl.u32 %v77, 7
    %v79 = vsub.s32 0, %v78
    %v80 = vrot.slane %v55, %v79
    %v81 = vmul.f32 %v60, %v80
    %v82 = vmul.f32 %v65, %v80
    %v83 = vmul.f32 %v70, %v80
    %v84 = vmul.f32 %v75, %v80
    %v86 = vlaneseq
    %v87 = vshrl.u32 %v86, 7
    %v88 = vsub.s32 0, %v87
    %v89 = vrot.slane %v56, %v88
    %v91 = vadd.f32 %v89, %v81
    %v92 = vadd.f32 %v89, %v82
    %v93 = vadd.f32 %v89, %v83
    %v94 = vadd.f32 %v89, %v84
    %95 = vset.pattern.permute.xlu0 1
    %96 = vperm.xlu0 %95, %v51
    %v97 = vpop.permute.xlu0 %96
    %99 = vset.pattern.permute.xlu0 1
    %100 = vperm.xlu0 %99, %v52
    %v101 = vpop.permute.xlu0 %100
    %103 = vset.pattern.permute.xlu0 1
    %104 = vperm.xlu0 %103, %v53
    %v105 = vpop.permute.xlu0 %104
    %107 = vset.pattern.permute.xlu0 1
    %108 = vperm.xlu0 %107, %v54
    %v109 = vpop.permute.xlu0 %108
    %v111 = vlaneseq
    %v112 = vshrl.u32 %v111, 7
    %v113 = vsub.s32 1, %v112
    %v114 = vrot.slane %v55, %v113
    %v115 = vmul.f32 %v97, %v114
    %v116 = vmul.f32 %v101, %v114
    %v117 = vmul.f32 %v105, %v114
    %v118 = vmul.f32 %v109, %v114
    %v119 = vadd.f32 %v91, %v115
    %v120 = vadd.f32 %v92, %v116
    %v121 = vadd.f32 %v93, %v117
    %v122 = vadd.f32 %v94, %v118
    %123 = vset.pattern.permute.xlu0 2
    %124 = vperm.xlu0 %123, %v51
    %v125 = vpop.permute.xlu0 %124
    %127 = vset.pattern.permute.xlu0 2
    %128 = vperm.xlu0 %127, %v52
    %v129 = vpop.permute.xlu0 %128
    %131 = vset.pattern.permute.xlu0 2
    %132 = vperm.xlu0 %131, %v53
    %v133 = vpop.permute.xlu0 %132
    %135 = vset.pattern.permute.xlu0 2
    %136 = vperm.xlu0 %135, %v54
    %v137 = vpop.permute.xlu0 %136
    %v139 = vlaneseq
    %v140 = vshrl.u32 %v139, 7
    %v141 = vsub.s32 2, %v140
    %v142 = vrot.slane %v55, %v141
    %v143 = vmul.f32 %v125, %v142
    %v144 = vmul.f32 %v129, %v142
    %v145 = vmul.f32 %v133, %v142
    %v146 = vmul.f32 %v137, %v142
    %v147 = vadd.f32 %v119, %v143
    %v148 = vadd.f32 %v120, %v144
    %v149 = vadd.f32 %v121, %v145
    %v150 = vadd.f32 %v122, %v146
    %151 = vset.pattern.permute.xlu0 3
    %152 = vperm.xlu0 %151, %v51
    %v153 = vpop.permute.xlu0 %152
    %155 = vset.pattern.permute.xlu0 3
    %156 = vperm.xlu0 %155, %v52
    %v157 = vpop.permute.xlu0 %156
    %159 = vset.pattern.permute.xlu0 3
    %160 = vperm.xlu0 %159, %v53
    %v161 = vpop.permute.xlu0 %160
    %163 = vset.pattern.permute.xlu0 3
    %164 = vperm.xlu0 %163, %v54
    %v165 = vpop.permute.xlu0 %164
    %v167 = vlaneseq
    %v168 = vshrl.u32 %v167, 7
    %v169 = vsub.s32 3, %v168
    %v170 = vrot.slane %v55, %v169
    %v171 = vmul.f32 %v153, %v170
    %v172 = vmul.f32 %v157, %v170
    %v173 = vmul.f32 %v161, %v170
    %v174 = vmul.f32 %v165, %v170
    %v175 = vadd.f32 %v147, %v171
    %v176 = vadd.f32 %v148, %v172
    %v177 = vadd.f32 %v149, %v173
    %v178 = vadd.f32 %v150, %v174
    %v179 = vmax.f32 %v175, 0.0
    %v180 = vmax.f32 %v176, 0.0
    %v181 = vmax.f32 %v177, 0.0
    %v182 = vmax.f32 %v178, 0.0
    %v183 = vld [vmem:[%s4] sm:$0xff]
    %v184 = vld [vmem:[%s4 + $0x8] sm:$0xff]
    %v185 = vld [vmem:[%s4 + $0x10] sm:$0xff]
    %v186 = vld [vmem:[%s4 + $0x18] sm:$0xff]
    %v187 = vld [vmem:[%s5] sm:$0x1]
    %v189 = vlaneseq
    %v190 = vshrl.u32 %v189, 7
    %v191 = vsub.s32 0, %v190
    %v192 = vrot.slane %v187, %v191
    %vm194 = vcmask 261120
    %v196 = vsel %vm194, %v179, 0
    %v199 = vsel %vm194, %v180, 0
    %v202 = vsel %vm194, %v181, 0
    %v205 = vsel %vm194, %v182, 0
    %207 = vmatprep.subr.mxu0 0.0
    %208 = vmatpush1.msra.mxu0 %v183
    %209 = vmatprep.subr.mxu0 0.0
    %210 = vmatpush1.msra.mxu0 %v184
    %211 = vmatprep.subr.mxu0 0.0
    %212 = vmatpush1.msra.mxu0 %v185
    %213 = vmatprep.subr.mxu0 0.0
    %214 = vmatpush1.msra.mxu0 %v186
    %215 = vmatprep.subr.mxu0 0.0
    %216 = vmatpush1.msra.mxu0 0.0
    %217 = vmatprep.subr.mxu0 0.0
    %218 = vmatpush1.msra.mxu0 0.0
    %219 = vmatprep.subr.mxu0 0.0
    %220 = vmatpush1.msra.mxu0 0.0
    %221 = vmatprep.subr.mxu0 0.0
    %222 = vmatpush1.msra.mxu0 0.0
    %223 = vmatprep.subr.mxu0 0.0
    %224 = vmatpush1.msra.mxu0 0.0
    %225 = vmatprep.subr.mxu0 0.0
    %226 = vmatpush1.msra.mxu0 0.0
    %227 = vmatprep.subr.mxu0 0.0
    %228 = vmatpush1.msra.mxu0 0.0
    %229 = vmatprep.subr.mxu0 0.0
    %230 = vmatpush1.msra.mxu0 0.0
    %231 = vmatprep.subr.mxu0 0.0
    %232 = vmatpush1.msra.mxu0 0.0
    %233 = vmatprep.subr.mxu0 0.0
    %234 = vmatpush1.msra.mxu0 0.0
    %235 = vmatprep.subr.mxu0 0.0
    %236 = vmatpush1.msra.mxu0 0.0
    %237 = vmatprep.subr.mxu0 0.0
    %238 = vmatpush1.msra.mxu0 0.0
    %239 = vmatprep.subr.mxu0 0.0
    %240 = vmatpush1.msra.mxu0 0.0
    %241 = vmatprep.subr.mxu0 0.0
    %242 = vmatpush1.msra.mxu0 0.0
    %243 = vmatprep.subr.mxu0 0.0
    %244 = vmatpush1.msra.mxu0 0.0
    %245 = vmatprep.subr.mxu0 0.0
    %246 = vmatpush1.msra.mxu0 0.0
    %247 = vmatprep.subr.mxu0 0.0
    %248 = vmatpush1.msra.mxu0 0.0
    %249 = vmatprep.subr.mxu0 0.0
    %250 = vmatpush1.msra.mxu0 0.0
    %251 = vmatprep.subr.mxu0 0.0
    %252 = vmatpush1.msra.mxu0 0.0
    %253 = vmatprep.subr.mxu0 0.0
    %254 = vmatpush1.msra.mxu0 0.0
    %255 = vmatprep.subr.mxu0 0.0
    %256 = vmatpush1.msra.mxu0 0.0
    %257 = vmatprep.subr.mxu0 0.0
    %258 = vmatpush1.msra.mxu0 0.0
    %259 = vmatprep.subr.mxu0 0.0
    %260 = vmatpush1.msra.mxu0 0.0
    %261 = vmatprep.subr.mxu0 0.0
    %262 = vmatpush1.msra.mxu0 0.0
    %263 = vmatprep.subr.mxu0 0.0
    %264 = vmatpush1.msra.mxu0 0.0
    %265 = vmatprep.subr.mxu0 0.0
    %266 = vmatpush1.msra.mxu0 0.0
    %267 = vmatprep.subr.mxu0 0.0
    %268 = vmatpush1.msra.mxu0 0.0
    %269 = vmatprep.subr.mxu0 0.0
    %270 = vmatpush1.msra.mxu0 0.0
    %271 = vmatprep.mubr.f32.mxu0 0.0
    %272 = vmatmul.mubr.f32.gmra.mrb[0].mxu0 %v196
    %v273 = vpop.f32.mrb[0].mxu0
    %v274 = vadd.f32 %v192, %v273
    %v275 = vpop.f32.mrb[0].mxu0
    %276 = vmatprep.mubr.f32.mxu0 0.0
    %277 = vmatmul.mubr.f32.gmra.mrb[0].mxu0 %v199
    %v278 = vpop.f32.mrb[0].mxu0
    %v279 = vadd.f32 %v192, %v278
    %v280 = vpop.f32.mrb[0].mxu0
    %281 = vmatprep.mubr.f32.mxu0 0.0
    %282 = vmatmul.mubr.f32.gmra.mrb[0].mxu0 %v202
    %v283 = vpop.f32.mrb[0].mxu0
    %v284 = vadd.f32 %v192, %v283
    %v285 = vpop.f32.mrb[0].mxu0
    %286 = vmatprep.mubr.f32.mxu0 0.0
    %287 = vmatmul.mubr.f32.gmra.mrb[0].mxu0 %v205
    %v288 = vpop.f32.mrb[0].mxu0
    %v289 = vadd.f32 %v192, %v288
    %v290 = vpop.f32.mrb[0].mxu0
    %291 = vdwg.mxu0
    %292 = vst.msk [vmem:[#allocation5] sm:$0xff] %vm194, %v274
    %293 = vst.msk [vmem:[#allocation5 + $0x8] sm:$0xff] %vm194, %v279
    %294 = vst.msk [vmem:[#allocation5 + $0x10] sm:$0xff] %vm194, %v284
    %295 = vst.msk [vmem:[#allocation5 + $0x18] sm:$0xff] %vm194, %v289
    %v296 = vld [vmem:[%s1] sm:$0xff]
    %v297 = vld [vmem:[%s1 + $0x8] sm:$0xff]
    %v298 = vld [vmem:[%s1 + $0x10] sm:$0xff]
    %v299 = vld [vmem:[%s1 + $0x18] sm:$0xff]
    %v300 = vld [vmem:[%s6] sm:$0x3f]
    %v301 = vld [vmem:[%s7] sm:$0x1]
    %303 = vset.pattern.permute.xlu0 0
    %304 = vperm.xlu0 %303, %v296
    %v305 = vpop.permute.xlu0 %304
    %308 = vset.pattern.permute.xlu0 0
    %309 = vperm.xlu0 %308, %v297
    %v310 = vpop.permute.xlu0 %309
    %313 = vset.pattern.permute.xlu0 0
    %314 = vperm.xlu0 %313, %v298
    %v315 = vpop.permute.xlu0 %314
    %318 = vset.pattern.permute.xlu0 0
    %319 = vperm.xlu0 %318, %v299
    %v320 = vpop.permute.xlu0 %319
    %v322 = vlaneseq
    %v323 = vshrl.u32 %v322, 7
    %v324 = vsub.s32 0, %v323
    %v325 = vrot.slane %v300, %v324
    %v326 = vmul.f32 %v305, %v325
    %v327 = vmul.f32 %v310, %v325
    %v328 = vmul.f32 %v315, %v325
    %v329 = vmul.f32 %v320, %v325
    %v331 = vlaneseq
    %v332 = vshrl.u32 %v331, 7
    %v333 = vsub.s32 0, %v332
    %v334 = vrot.slane %v301, %v333
    %v336 = vadd.f32 %v334, %v326
    %v337 = vadd.f32 %v334, %v327
    %v338 = vadd.f32 %v334, %v328
    %v339 = vadd.f32 %v334, %v329
    %340 = vset.pattern.permute.xlu0 1
    %341 = vperm.xlu0 %340, %v296
    %v342 = vpop.permute.xlu0 %341
    %344 = vset.pattern.permute.xlu0 1
    %345 = vperm.xlu0 %344, %v297
    %v346 = vpop.permute.xlu0 %345
    %348 = vset.pattern.permute.xlu0 1
    %349 = vperm.xlu0 %348, %v298
    %v350 = vpop.permute.xlu0 %349
    %352 = vset.pattern.permute.xlu0 1
    %353 = vperm.xlu0 %352, %v299
    %v354 = vpop.permute.xlu0 %353
    %v356 = vlaneseq
    %v357 = vshrl.u32 %v356, 7
    %v358 = vsub.s32 1, %v357
    %v359 = vrot.slane %v300, %v358
    %v360 = vmul.f32 %v342, %v359
    %v361 = vmul.f32 %v346, %v359
    %v362 = vmul.f32 %v350, %v359
    %v363 = vmul.f32 %v354, %v359
    %v364 = vadd.f32 %v336, %v360
    %v365 = vadd.f32 %v337, %v361
    %v366 = vadd.f32 %v338, %v362
    %v367 = vadd.f32 %v339, %v363
    %368 = vset.pattern.permute.xlu0 2
    %369 = vperm.xlu0 %368, %v296
    %v370 = vpop.permute.xlu0 %369
    %372 = vset.pattern.permute.xlu0 2
    %373 = vperm.xlu0 %372, %v297
    %v374 = vpop.permute.xlu0 %373
    %376 = vset.pattern.permute.xlu0 2
    %377 = vperm.xlu0 %376, %v298
    %v378 = vpop.permute.xlu0 %377
    %380 = vset.pattern.permute.xlu0 2
    %381 = vperm.xlu0 %380, %v299
    %v382 = vpop.permute.xlu0 %381
    %v384 = vlaneseq
    %v385 = vshrl.u32 %v384, 7
    %v386 = vsub.s32 2, %v385
    %v387 = vrot.slane %v300, %v386
    %v388 = vmul.f32 %v370, %v387
    %v389 = vmul.f32 %v374, %v387
    %v390 = vmul.f32 %v378, %v387
    %v391 = vmul.f32 %v382, %v387
    %v392 = vadd.f32 %v364, %v388
    %v393 = vadd.f32 %v365, %v389
    %v394 = vadd.f32 %v366, %v390
    %v395 = vadd.f32 %v367, %v391
    %396 = vset.pattern.permute.xlu0 3
    %397 = vperm.xlu0 %396, %v296
    %v398 = vpop.permute.xlu0 %397
    %400 = vset.pattern.permute.xlu0 3
    %401 = vperm.xlu0 %400, %v297
    %v402 = vpop.permute.xlu0 %401
    %404 = vset.pattern.permute.xlu0 3
    %405 = vperm.xlu0 %404, %v298
    %v406 = vpop.permute.xlu0 %405
    %408 = vset.pattern.permute.xlu0 3
    %409 = vperm.xlu0 %408, %v299
    %v410 = vpop.permute.xlu0 %409
    %v412 = vlaneseq
    %v413 = vshrl.u32 %v412, 7
    %v414 = vsub.s32 3, %v413
    %v415 = vrot.slane %v300, %v414
    %v416 = vmul.f32 %v398, %v415
    %v417 = vmul.f32 %v402, %v415
    %v418 = vmul.f32 %v406, %v415
    %v419 = vmul.f32 %v410, %v415
    %v420 = vadd.f32 %v392, %v416
    %v421 = vadd.f32 %v393, %v417
    %v422 = vadd.f32 %v394, %v418
    %v423 = vadd.f32 %v395, %v419
    %424 = vset.pattern.permute.xlu0 4
    %425 = vperm.xlu0 %424, %v296
    %v426 = vpop.permute.xlu0 %425
    %428 = vset.pattern.permute.xlu0 4
    %429 = vperm.xlu0 %428, %v297
    %v430 = vpop.permute.xlu0 %429
    %432 = vset.pattern.permute.xlu0 4
    %433 = vperm.xlu0 %432, %v298
    %v434 = vpop.permute.xlu0 %433
    %436 = vset.pattern.permute.xlu0 4
    %437 = vperm.xlu0 %436, %v299
    %v438 = vpop.permute.xlu0 %437
    %v440 = vlaneseq
    %v441 = vshrl.u32 %v440, 7
    %v442 = vsub.s32 4, %v441
    %v443 = vrot.slane %v300, %v442
    %v444 = vmul.f32 %v426, %v443
    %v445 = vmul.f32 %v430, %v443
    %v446 = vmul.f32 %v434, %v443
    %v447 = vmul.f32 %v438, %v443
    %v448 = vadd.f32 %v420, %v444
    %v449 = vadd.f32 %v421, %v445
    %v450 = vadd.f32 %v422, %v446
    %v451 = vadd.f32 %v423, %v447
    %452 = vset.pattern.permute.xlu0 5
    %453 = vperm.xlu0 %452, %v296
    %v454 = vpop.permute.xlu0 %453
    %456 = vset.pattern.permute.xlu0 5
    %457 = vperm.xlu0 %456, %v297
    %v458 = vpop.permute.xlu0 %457
    %460 = vset.pattern.permute.xlu0 5
    %461 = vperm.xlu0 %460, %v298
    %v462 = vpop.permute.xlu0 %461
    %464 = vset.pattern.permute.xlu0 5
    %465 = vperm.xlu0 %464, %v299
    %v466 = vpop.permute.xlu0 %465
    %v468 = vlaneseq
    %v469 = vshrl.u32 %v468, 7
    %v470 = vsub.s32 5, %v469
    %v471 = vrot.slane %v300, %v470
    %v472 = vmul.f32 %v454, %v471
    %v473 = vmul.f32 %v458, %v471
    %v474 = vmul.f32 %v462, %v471
    %v475 = vmul.f32 %v466, %v471
    %v476 = vadd.f32 %v448, %v472
    %v477 = vadd.f32 %v449, %v473
    %v478 = vadd.f32 %v450, %v474
    %v479 = vadd.f32 %v451, %v475
    %v480 = vmax.f32 %v476, 0.0
    %v481 = vmax.f32 %v477, 0.0
    %v482 = vmax.f32 %v478, 0.0
    %v483 = vmax.f32 %v479, 0.0
    %v484 = vld [vmem:[%s8] sm:$0xff]
    %v485 = vld [vmem:[%s8 + $0x8] sm:$0xff]
    %v486 = vld [vmem:[%s8 + $0x10] sm:$0xff]
    %v487 = vld [vmem:[%s8 + $0x18] sm:$0xff]
    %v488 = vld [vmem:[%s9] sm:$0x1]
    %v490 = vlaneseq
    %v491 = vshrl.u32 %v490, 7
    %v492 = vsub.s32 0, %v491
    %v493 = vrot.slane %v488, %v492
    %v496 = vsel %vm194, %v480, 0
    %v499 = vsel %vm194, %v481, 0
    %v502 = vsel %vm194, %v482, 0
    %v505 = vsel %vm194, %v483, 0
    %507 = vmatprep.subr.mxu0 0.0
    %508 = vmatpush1.msra.mxu0 %v484
    %509 = vmatprep.subr.mxu0 0.0
    %510 = vmatpush1.msra.mxu0 %v485
    %511 = vmatprep.subr.mxu0 0.0
    %512 = vmatpush1.msra.mxu0 %v486
    %513 = vmatprep.subr.mxu0 0.0
    %514 = vmatpush1.msra.mxu0 %v487
    %515 = vmatprep.subr.mxu0 0.0
    %516 = vmatpush1.msra.mxu0 0.0
    %517 = vmatprep.subr.mxu0 0.0
    %518 = vmatpush1.msra.mxu0 0.0
    %519 = vmatprep.subr.mxu0 0.0
    %520 = vmatpush1.msra.mxu0 0.0
    %521 = vmatprep.subr.mxu0 0.0
    %522 = vmatpush1.msra.mxu0 0.0
    %523 = vmatprep.subr.mxu0 0.0
    %524 = vmatpush1.msra.mxu0 0.0
    %525 = vmatprep.subr.mxu0 0.0
    %526 = vmatpush1.msra.mxu0 0.0
    %527 = vmatprep.subr.mxu0 0.0
    %528 = vmatpush1.msra.mxu0 0.0
    %529 = vmatprep.subr.mxu0 0.0
    %530 = vmatpush1.msra.mxu0 0.0
    %531 = vmatprep.subr.mxu0 0.0
    %532 = vmatpush1.msra.mxu0 0.0
    %533 = vmatprep.subr.mxu0 0.0
    %534 = vmatpush1.msra.mxu0 0.0
    %535 = vmatprep.subr.mxu0 0.0
    %536 = vmatpush1.msra.mxu0 0.0
    %537 = vmatprep.subr.mxu0 0.0
    %538 = vmatpush1.msra.mxu0 0.0
    %539 = vmatprep.subr.mxu0 0.0
    %540 = vmatpush1.msra.mxu0 0.0
    %541 = vmatprep.subr.mxu0 0.0
    %542 = vmatpush1.msra.mxu0 0.0
    %543 = vmatprep.subr.mxu0 0.0
    %544 = vmatpush1.msra.mxu0 0.0
    %545 = vmatprep.subr.mxu0 0.0
    %546 = vmatpush1.msra.mxu0 0.0
    %547 = vmatprep.subr.mxu0 0.0
    %548 = vmatpush1.msra.mxu0 0.0
    %549 = vmatprep.subr.mxu0 0.0
    %550 = vmatpush1.msra.mxu0 0.0
    %551 = vmatprep.subr.mxu0 0.0
    %552 = vmatpush1.msra.mxu0 0.0
    %553 = vmatprep.subr.mxu0 0.0
    %554 = vmatpush1.msra.mxu0 0.0
    %555 = vmatprep.subr.mxu0 0.0
    %556 = vmatpush1.msra.mxu0 0.0
    %557 = vmatprep.subr.mxu0 0.0
    %558 = vmatpush1.msra.mxu0 0.0
    %559 = vmatprep.subr.mxu0 0.0
    %560 = vmatpush1.msra.mxu0 0.0
    %561 = vmatprep.subr.mxu0 0.0
    %562 = vmatpush1.msra.mxu0 0.0
    %563 = vmatprep.subr.mxu0 0.0
    %564 = vmatpush1.msra.mxu0 0.0
    %565 = vmatprep.subr.mxu0 0.0
    %566 = vmatpush1.msra.mxu0 0.0
    %567 = vmatprep.subr.mxu0 0.0
    %568 = vmatpush1.msra.mxu0 0.0
    %569 = vmatprep.subr.mxu0 0.0
    %570 = vmatpush1.msra.mxu0 0.0
    %571 = vmatprep.mubr.f32.mxu0 0.0
    %572 = vmatmul.mubr.f32.gmra.mrb[0].mxu0 %v496
    %v573 = vpop.f32.mrb[0].mxu0
    %v574 = vadd.f32 %v493, %v573
    %v575 = vpop.f32.mrb[0].mxu0
    %576 = vmatprep.mubr.f32.mxu0 0.0
    %577 = vmatmul.mubr.f32.gmra.mrb[0].mxu0 %v499
    %v578 = vpop.f32.mrb[0].mxu0
    %v579 = vadd.f32 %v493, %v578
    %v580 = vpop.f32.mrb[0].mxu0
    %581 = vmatprep.mubr.f32.mxu0 0.0
    %582 = vmatmul.mubr.f32.gmra.mrb[0].mxu0 %v502
    %v583 = vpop.f32.mrb[0].mxu0
    %v584 = vadd.f32 %v493, %v583
    %v585 = vpop.f32.mrb[0].mxu0
    %586 = vmatprep.mubr.f32.mxu0 0.0
    %587 = vmatmul.mubr.f32.gmra.mrb[0].mxu0 %v505
    %v588 = vpop.f32.mrb[0].mxu0
    %v589 = vadd.f32 %v493, %v588
    %v590 = vpop.f32.mrb[0].mxu0
    %591 = vdwg.mxu0
    %592 = vst.msk [vmem:[#allocation6] sm:$0xff] %vm194, %v574
    %593 = vst.msk [vmem:[#allocation6 + $0x8] sm:$0xff] %vm194, %v579
    %594 = vst.msk [vmem:[#allocation6 + $0x10] sm:$0xff] %vm194, %v584
    %595 = vst.msk [vmem:[#allocation6 + $0x18] sm:$0xff] %vm194, %v589
    // Predicated region
    $region46: #{tpu_custom_call.1} parent=1 // pred_check
      _
    $region47: #{tpu_custom_call.1} parent=1 // pred_check_branch
      %597 = sbr.rel (0) target = $region49
    $region48: #{tpu_custom_call.1} parent=1 // pred_region
      %s599 = ssub.s32 512, 512
      %600 = vsyncadd [#allocation4], %s599
      %s601 = sshll.u32 [#allocation5], 4
      %s602 = int_to_ptr.vmem [resolvable:$true] %s601
      %607 = dma.vmem_to_hbm [thread:$0]  %s602, 512, %s10, [#allocation4], 128, 128, 8
    $region49: #{tpu_custom_call.1} parent=1 // pred_fallthru
      _
    // Predicated region
    $region50: #{tpu_custom_call.1} parent=1 // pred_check
      _
    $region51: #{tpu_custom_call.1} parent=1 // pred_check_branch
      %609 = sbr.rel (0) target = $region53
    $region52: #{tpu_custom_call.1} parent=1 // pred_region
      %s611 = ssub.s32 512, 512
      %612 = vsyncadd [#allocation7], %s611
      %s613 = sshll.u32 [#allocation6], 4
      %s614 = int_to_ptr.vmem [resolvable:$true] %s613
      %619 = dma.vmem_to_hbm [thread:$0]  %s614, 512, %s11, [#allocation7], 128, 128, 8
    $region53: #{tpu_custom_call.1} parent=1 // pred_fallthru
      _
    // Predicated region
    $region54: #{tpu_custom_call.1} parent=1 // pred_check
      _
    $region55: #{tpu_custom_call.1} parent=1 // pred_check_branch
      %621 = sbr.rel (0) target = $region57
    $region56: #{tpu_custom_call.1} parent=1 // pred_region
      %622 = dma.done [#allocation4], 512
    $region57: #{tpu_custom_call.1} parent=1 // pred_fallthru
      _
    // Predicated region
    $region58: #{tpu_custom_call.1} parent=1 // pred_check
      _
    $region59: #{tpu_custom_call.1} parent=1 // pred_check_branch
      %624 = sbr.rel (0) target = $region61
    $region60: #{tpu_custom_call.1} parent=1 // pred_region
      %625 = dma.done [#allocation7], 512
    $region61: #{tpu_custom_call.1} parent=1 // pred_fallthru
      _
    %626 = vsyncpa [#allocation3], 1
    %627 = vsyncpa [#allocation4], 1
    %628 = vsyncpa [#allocation7], 1

</llo_original>
